<compile_context>
chip_gen: v7x
topology: tpu7x:2x2x1
jax: 0.10.0
libtpu: 0.0.40
codegen_flags: <defaults>
</compile_context>

<pallas_src>
import jax
import jax.numpy as jnp
from jax.experimental import pallas as pl
from jax.experimental.pallas import tpu as pltpu


def _cast_kernel(xb_ref, xi_ref, xf_ref,
                 b2i_ref, b2f_ref,
                 i2b_ref, i2f_ref,
                 f2b_ref, f2i_ref):
    xb = xb_ref[...]          # int8 holding 0/1 (bool input, widened in wrapper)
    xi = xi_ref[...]          # int32
    xf = xf_ref[...]          # float32

    # bool -> int / float
    b_mask = xb != 0
    b2i_ref[...] = b_mask.astype(jnp.int32)      # torch .int()   -> int32
    b2f_ref[...] = b_mask.astype(jnp.float32)    # torch .float() -> float32

    # int -> bool / float
    i2b_ref[...] = (xi != 0).astype(jnp.int8)    # bool result as 0/1 int8
    i2f_ref[...] = xi.astype(jnp.float32)

    # float -> bool / int
    f2b_ref[...] = (xf != 0.0).astype(jnp.int8)  # bool result as 0/1 int8
    f2i_ref[...] = xf.astype(jnp.int32)          # trunc toward zero == torch


def _pick_block_rows(R):
    # Whole array at small sizes; lane-dense row tiles (multiples of the
    # int8 sublane tile = 32) when large, so the pipeline double-buffers.
    if R <= 512:
        return R
    for cand in (512, 256, 128, 64, 32):
        if R % cand == 0:
            return cand
    return R


@jax.jit
def cast_model(x_bool, x_int, x_float, x_scalar):
    """Mirrors Model.forward. Returns the 10-tuple of casted arrays."""
    shape = x_bool.shape
    R, C = shape
    xb_i8 = x_bool.astype(jnp.int8)          # glue: bool -> int8 0/1 for VMEM

    block_r = _pick_block_rows(R)
    grid = (R // block_r,)
    bs = pl.BlockSpec((block_r, C), lambda i: (i, 0))

    outs = pl.pallas_call(
        _cast_kernel,
        out_shape=(
            jax.ShapeDtypeStruct(shape, jnp.int32),    # bool  -> int32
            jax.ShapeDtypeStruct(shape, jnp.float32),  # bool  -> float32
            jax.ShapeDtypeStruct(shape, jnp.int8),     # int   -> bool (as i8)
            jax.ShapeDtypeStruct(shape, jnp.float32),  # int   -> float32
            jax.ShapeDtypeStruct(shape, jnp.int8),     # float -> bool (as i8)
            jax.ShapeDtypeStruct(shape, jnp.int32),    # float -> int32
        ),
        grid=grid,
        in_specs=[bs, bs, bs],
        out_specs=(bs, bs, bs, bs, bs, bs),
        compiler_params=pltpu.CompilerParams(
            dimension_semantics=("parallel",)),
    )(xb_i8, x_int, x_float)

    b2i, b2f, i2b, i2f, f2b, f2i = outs

    # Identity casts + scalar cast: pure wrapper glue, no kernel work.
    b2b = x_bool.astype(jnp.bool_)          # already bool -> no-op
    i2i = x_int                             # identity, aliased by XLA
    f2f = x_float                           # identity, aliased by XLA
    s2i = x_scalar.astype(jnp.int32)        # scalar .int(), trunc toward zero

    return (b2b, b2i, b2f,
            i2b.astype(jnp.bool_), i2i, i2f,
            f2b.astype(jnp.bool_), f2i, f2f,
            s2i)


if __name__ == "__main__":
    key = jax.random.PRNGKey(0)
    kb, ki, kf = jax.random.split(key, 3)

    R, C = 32, 128  # small, lane-aligned elementwise tile (32 = int8 sublane tile)
    x_bool = jax.random.bernoulli(kb, p=0.5, shape=(R, C))
    x_int = jax.random.randint(ki, (R, C), minval=-5, maxval=6, dtype=jnp.int32)
    x_float = jax.random.normal(kf, (R, C), dtype=jnp.float32) * 3.0
    x_scalar = jnp.float32(3.7)

    outs = cast_model(x_bool, x_int, x_float, x_scalar)
    outs = jax.block_until_ready(outs)

    # light correctness checks against plain-JAX reference semantics
    assert outs[0].dtype == jnp.bool_ and bool(jnp.all(outs[0] == x_bool))
    assert outs[1].dtype == jnp.int32 and bool(jnp.all(outs[1] == x_bool.astype(jnp.int32)))
    assert outs[2].dtype == jnp.float32 and bool(jnp.all(outs[2] == x_bool.astype(jnp.float32)))
    assert outs[3].dtype == jnp.bool_ and bool(jnp.all(outs[3] == (x_int != 0)))
    assert outs[4].dtype == jnp.int32 and bool(jnp.all(outs[4] == x_int))
    assert outs[5].dtype == jnp.float32 and bool(jnp.all(outs[5] == x_int.astype(jnp.float32)))
    assert outs[6].dtype == jnp.bool_ and bool(jnp.all(outs[6] == (x_float != 0.0)))
    assert outs[7].dtype == jnp.int32 and bool(jnp.all(outs[7] == x_float.astype(jnp.int32)))
    assert outs[8].dtype == jnp.float32 and bool(jnp.all(outs[8] == x_float))
    assert outs[9].dtype == jnp.int32 and int(outs[9]) == 3

    print("KERNEL_OK")
</pallas_src>

<mosaic_0001>
module attributes {stable_mosaic.version = 11 : i64} {
  func.func @_cast_kernel(%arg0: i32, %arg1: memref<32x128xi8, #tpu.memory_space<vmem>>, %arg2: memref<32x128xi32, #tpu.memory_space<vmem>>, %arg3: memref<32x128xf32, #tpu.memory_space<vmem>>, %arg4: memref<32x128xi32, #tpu.memory_space<vmem>>, %arg5: memref<32x128xf32, #tpu.memory_space<vmem>>, %arg6: memref<32x128xi8, #tpu.memory_space<vmem>>, %arg7: memref<32x128xf32, #tpu.memory_space<vmem>>, %arg8: memref<32x128xi8, #tpu.memory_space<vmem>>, %arg9: memref<32x128xi32, #tpu.memory_space<vmem>>) attributes {dimension_semantics = [#tpu.dimension_semantics<parallel>], iteration_bounds = array<i64: 1>, scalar_prefetch = 0 : i64, scratch_operands = 0 : i64, tpu.core_type = #tpu.core_type<tc>, window_params = [{transform_indices = @transform_0, window_bounds = array<i64: 32, 128>}, {transform_indices = @transform_1, window_bounds = array<i64: 32, 128>}, {transform_indices = @transform_2, window_bounds = array<i64: 32, 128>}, {transform_indices = @transform_3, window_bounds = array<i64: 32, 128>}, {transform_indices = @transform_4, window_bounds = array<i64: 32, 128>}, {transform_indices = @transform_5, window_bounds = array<i64: 32, 128>}, {transform_indices = @transform_6, window_bounds = array<i64: 32, 128>}, {transform_indices = @transform_7, window_bounds = array<i64: 32, 128>}, {transform_indices = @transform_8, window_bounds = array<i64: 32, 128>}]} {
    %c0 = arith.constant 0 : index
    %c0_0 = arith.constant 0 : index
    %0 = vector.load %arg1[%c0, %c0_0] : memref<32x128xi8, #tpu.memory_space<vmem>>, vector<32x128xi8>
    %c0_1 = arith.constant 0 : index
    %c0_2 = arith.constant 0 : index
    %1 = vector.load %arg2[%c0_1, %c0_2] : memref<32x128xi32, #tpu.memory_space<vmem>>, vector<32x128xi32>
    %c0_3 = arith.constant 0 : index
    %c0_4 = arith.constant 0 : index
    %2 = vector.load %arg3[%c0_3, %c0_4] : memref<32x128xf32, #tpu.memory_space<vmem>>, vector<32x128xf32>
    %c0_i8 = arith.constant 0 : i8
    %3 = vector.broadcast %c0_i8 : i8 to vector<32x128xi8>
    %4 = arith.cmpi ne, %0, %3 : vector<32x128xi8>
    %5 = arith.extui %4 : vector<32x128xi1> to vector<32x128xi32>
    %c0_5 = arith.constant 0 : index
    %c0_6 = arith.constant 0 : index
    %6 = vector.load %arg4[%c0_5, %c0_6] : memref<32x128xi32, #tpu.memory_space<vmem>>, vector<32x128xi32>
    tpu.vector_store %arg4[%c0_5, %c0_6], %5 {strides = array<i32>} : memref<32x128xi32, #tpu.memory_space<vmem>>, vector<32x128xi32>,
    %7 = arith.extui %4 : vector<32x128xi1> to vector<32x128xi32>
    %8 = arith.sitofp %7 : vector<32x128xi32> to vector<32x128xf32>
    %c0_7 = arith.constant 0 : index
    %c0_8 = arith.constant 0 : index
    %9 = vector.load %arg5[%c0_7, %c0_8] : memref<32x128xf32, #tpu.memory_space<vmem>>, vector<32x128xf32>
    tpu.vector_store %arg5[%c0_7, %c0_8], %8 {strides = array<i32>} : memref<32x128xf32, #tpu.memory_space<vmem>>, vector<32x128xf32>,
    %c0_i32 = arith.constant 0 : i32
    %10 = vector.broadcast %c0_i32 : i32 to vector<32x128xi32>
    %11 = arith.cmpi ne, %1, %10 : vector<32x128xi32>
    %12 = arith.extui %11 : vector<32x128xi1> to vector<32x128xi8>
    %c0_9 = arith.constant 0 : index
    %c0_10 = arith.constant 0 : index
    %13 = vector.load %arg6[%c0_9, %c0_10] : memref<32x128xi8, #tpu.memory_space<vmem>>, vector<32x128xi8>
    tpu.vector_store %arg6[%c0_9, %c0_10], %12 {strides = array<i32>} : memref<32x128xi8, #tpu.memory_space<vmem>>, vector<32x128xi8>,
    %14 = arith.sitofp %1 : vector<32x128xi32> to vector<32x128xf32>
    %c0_11 = arith.constant 0 : index
    %c0_12 = arith.constant 0 : index
    %15 = vector.load %arg7[%c0_11, %c0_12] : memref<32x128xf32, #tpu.memory_space<vmem>>, vector<32x128xf32>
    tpu.vector_store %arg7[%c0_11, %c0_12], %14 {strides = array<i32>} : memref<32x128xf32, #tpu.memory_space<vmem>>, vector<32x128xf32>,
    %cst = arith.constant 0.000000e+00 : f32
    %16 = vector.broadcast %cst : f32 to vector<32x128xf32>
    %17 = arith.cmpf one, %2, %16 : vector<32x128xf32>
    %18 = arith.extui %17 : vector<32x128xi1> to vector<32x128xi8>
    %c0_13 = arith.constant 0 : index
    %c0_14 = arith.constant 0 : index
    %19 = vector.load %arg8[%c0_13, %c0_14] : memref<32x128xi8, #tpu.memory_space<vmem>>, vector<32x128xi8>
    tpu.vector_store %arg8[%c0_13, %c0_14], %18 {strides = array<i32>} : memref<32x128xi8, #tpu.memory_space<vmem>>, vector<32x128xi8>,
    %20 = arith.fptosi %2 : vector<32x128xf32> to vector<32x128xi32>
    %c0_15 = arith.constant 0 : index
    %c0_16 = arith.constant 0 : index
    %21 = vector.load %arg9[%c0_15, %c0_16] : memref<32x128xi32, #tpu.memory_space<vmem>>, vector<32x128xi32>
    tpu.vector_store %arg9[%c0_15, %c0_16], %20 {strides = array<i32>} : memref<32x128xi32, #tpu.memory_space<vmem>>, vector<32x128xi32>,
    return
  }
  func.func @transform_0(%arg0: i32) -> (i32, i32) {
    %c0_i32 = arith.constant 0 : i32
    %c0_i32_0 = arith.constant 0 : i32
    return %arg0, %c0_i32 : i32, i32
  }
  func.func @transform_1(%arg0: i32) -> (i32, i32) {
    %c0_i32 = arith.constant 0 : i32
    %c0_i32_0 = arith.constant 0 : i32
    return %arg0, %c0_i32 : i32, i32
  }
  func.func @transform_2(%arg0: i32) -> (i32, i32) {
    %c0_i32 = arith.constant 0 : i32
    %c0_i32_0 = arith.constant 0 : i32
    return %arg0, %c0_i32 : i32, i32
  }
  func.func @transform_3(%arg0: i32) -> (i32, i32) {
    %c0_i32 = arith.constant 0 : i32
    %c0_i32_0 = arith.constant 0 : i32
    return %arg0, %c0_i32 : i32, i32
  }
  func.func @transform_4(%arg0: i32) -> (i32, i32) {
    %c0_i32 = arith.constant 0 : i32
    %c0_i32_0 = arith.constant 0 : i32
    return %arg0, %c0_i32 : i32, i32
  }
  func.func @transform_5(%arg0: i32) -> (i32, i32) {
    %c0_i32 = arith.constant 0 : i32
    %c0_i32_0 = arith.constant 0 : i32
    return %arg0, %c0_i32 : i32, i32
  }
  func.func @transform_6(%arg0: i32) -> (i32, i32) {
    %c0_i32 = arith.constant 0 : i32
    %c0_i32_0 = arith.constant 0 : i32
    return %arg0, %c0_i32 : i32, i32
  }
  func.func @transform_7(%arg0: i32) -> (i32, i32) {
    %c0_i32 = arith.constant 0 : i32
    %c0_i32_0 = arith.constant 0 : i32
    return %arg0, %c0_i32 : i32, i32
  }
  func.func @transform_8(%arg0: i32) -> (i32, i32) {
    %c0_i32 = arith.constant 0 : i32
    %c0_i32_0 = arith.constant 0 : i32
    return %arg0, %c0_i32 : i32, i32
  }
}

</mosaic_0001>

<llo_original>
// kernel: cast_model.1
$region0: #{cast_model.1}
  #allocation0 [shape = 'u32[]', space=smem, size = 0x4, offset = 0x4, fixed_abs, tag = 'smem constant byte address 0x4 - core index']
  #allocation1 [shape = 'u32[144,128]{1,0:T(1,128)}', space=vmem, size = 0x12000, scoped, tag = 'internal scratch']
  %s0 = inlined_call_operand.vmem [shape: s8[32,128], index: 0, kind: input, shape index: {}]
  %s1 = inlined_call_operand.hbm [shape: s32[32,128], index: 1, kind: input, shape index: {}]
  %s2 = inlined_call_operand.hbm [shape: f32[32,128], index: 2, kind: input, shape index: {}]
  %s3 = inlined_call_operand.hbm [shape: s32[32,128], index: 3, kind: output, shape index: {0}]
  %s4 = inlined_call_operand.hbm [shape: f32[32,128], index: 4, kind: output, shape index: {1}]
  %s5 = inlined_call_operand.vmem [shape: s8[32,128], index: 5, kind: output, shape index: {2}]
  %s6 = inlined_call_operand.hbm [shape: f32[32,128], index: 6, kind: output, shape index: {3}]
  %s7 = inlined_call_operand.vmem [shape: s8[32,128], index: 7, kind: output, shape index: {4}]
  %s8 = inlined_call_operand.hbm [shape: s32[32,128], index: 8, kind: output, shape index: {5}]
  %9 = xla_tuple %s3, %s4, %s5, %s6, %s7, %s8
  %s10 = sld [smem:[#allocation0]]
  $region70: #{cast_model.1} parent=0
    _
  %s12 = ssub.s32 1, %s10
  %s13 = scalar_select 0, %s12, %s10
  $region1: #{cast_model.1} parent=0
    #allocation2 [shape = 'u8[16384]{0}', space=vmem, size = 0x4000, scoped, tag = 'input window, operand 1, single buffered']
    #allocation3 [shape = 's32[1]{0}', space=sflag, size = 0x4, scoped, tag = 'scoped memory for cast_model.1']
    #allocation4 [shape = 's32[1]{0}', space=sflag, size = 0x4, scoped, tag = 'scoped memory for cast_model.1']
    #allocation5 [shape = 'u8[16384]{0}', space=vmem, size = 0x4000, scoped, tag = 'input window, operand 2, single buffered']
    #allocation6 [shape = 's32[1]{0}', space=sflag, size = 0x4, scoped, tag = 'scoped memory for cast_model.1']
    #allocation7 [shape = 'u8[16384]{0}', space=vmem, size = 0x4000, scoped, tag = 'output window, operand 0, single buffered']
    #allocation8 [shape = 'u8[16384]{0}', space=vmem, size = 0x4000, scoped, tag = 'output window, operand 1, single buffered']
    #allocation9 [shape = 's32[1]{0}', space=sflag, size = 0x4, scoped, tag = 'scoped memory for cast_model.1']
    #allocation10 [shape = 'u8[16384]{0}', space=vmem, size = 0x4000, scoped, tag = 'output window, operand 3, single buffered']
    #allocation11 [shape = 'u8[16384]{0}', space=vmem, size = 0x4000, scoped, tag = 'output window, operand 5, single buffered']
    #allocation12 [shape = 's32[1]{0}', space=sflag, size = 0x4, scoped, tag = 'scoped memory for cast_model.1']
    %14 = vsyncpa [#allocation3], 0
    %15 = vsyncpa [#allocation6], 0
    %16 = vsyncpa [#allocation4], 0
    %17 = vsyncpa [#allocation9], 0
    %18 = vsyncpa [#allocation12], 0
    // Predicated region
    $region2: #{cast_model.1} parent=1 // pred_check
      _
    $region3: #{cast_model.1} parent=1 // pred_check_branch
      %20 = sbr.rel (0) target = $region5
    $region4: #{cast_model.1} parent=1 // pred_region
      _
    $region5: #{cast_model.1} parent=1 // pred_fallthru
      _
    // Predicated region
    $region6: #{cast_model.1} parent=1 // pred_check
      _
    $region7: #{cast_model.1} parent=1 // pred_check_branch
      %22 = sbr.rel (0) target = $region9
    $region8: #{cast_model.1} parent=1 // pred_region
      %s24 = ssub.s32 512, 512
      %25 = vsyncadd [#allocation3], %s24
      %s26 = sshll.u32 [#allocation2], 4
      %s27 = int_to_ptr.vmem [resolvable:$true] %s26
      %32 = dma.hbm_to_vmem [thread:$0]  %s1, 512, %s27, [#allocation3], 128, 128, 8
    $region9: #{cast_model.1} parent=1 // pred_fallthru
      _
    // Predicated region
    $region10: #{cast_model.1} parent=1 // pred_check
      _
    $region11: #{cast_model.1} parent=1 // pred_check_branch
      %34 = sbr.rel (0) target = $region13
    $region12: #{cast_model.1} parent=1 // pred_region
      %s36 = ssub.s32 512, 512
      %37 = vsyncadd [#allocation6], %s36
      %s38 = sshll.u32 [#allocation5], 4
      %s39 = int_to_ptr.vmem [resolvable:$true] %s38
      %44 = dma.hbm_to_vmem [thread:$0]  %s2, 512, %s39, [#allocation6], 128, 128, 8
    $region13: #{cast_model.1} parent=1 // pred_fallthru
      _
    // Predicated region
    $region14: #{cast_model.1} parent=1 // pred_check
      _
    $region15: #{cast_model.1} parent=1 // pred_check_branch
      %46 = sbr.rel (0) target = $region17
    $region16: #{cast_model.1} parent=1 // pred_region
      %47 = dma.done [#allocation3], 512
    $region17: #{cast_model.1} parent=1 // pred_fallthru
      _
    // Predicated region
    $region18: #{cast_model.1} parent=1 // pred_check
      _
    $region19: #{cast_model.1} parent=1 // pred_check_branch
      %49 = sbr.rel (0) target = $region21
    $region20: #{cast_model.1} parent=1 // pred_region
      %50 = dma.done [#allocation6], 512
    $region21: #{cast_model.1} parent=1 // pred_fallthru
      _
    %v53 = vld [vmem:[%s0] sm:$0xff]
    %v54 = vld [vmem:[#allocation2] sm:$0xff]
    %v55 = vld [vmem:[#allocation2 + $0x8] sm:$0xff]
    %v56 = vld [vmem:[#allocation2 + $0x10] sm:$0xff]
    %v57 = vld [vmem:[#allocation2 + $0x18] sm:$0xff]
    %v58 = vld [vmem:[#allocation5] sm:$0xff]
    %v59 = vld [vmem:[#allocation5 + $0x8] sm:$0xff]
    %v60 = vld [vmem:[#allocation5 + $0x10] sm:$0xff]
    %v61 = vld [vmem:[#allocation5 + $0x18] sm:$0xff]
    %vm62 = vnez %v53
    %v63 = vsel %vm62, 16843009, 0
    %v64 = vunpack.c.0.s8 %v63
    %v65 = vunpack.c.1.s8 %v63
    %v66 = vunpack.c.2.s8 %v63
    %v67 = vunpack.c.3.s8 %v63
    %v68 = vpack.c.b16 %v64, %v64
    %v69 = vpack.c.b8 %v68, %v68
    %v70 = vpack.c.b16 %v65, %v65
    %v71 = vpack.c.b8 %v70, %v70
    %v72 = vpack.c.b16 %v66, %v66
    %v73 = vpack.c.b8 %v72, %v72
    %v74 = vpack.c.b16 %v67, %v67
    %v75 = vpack.c.b8 %v74, %v74
    %vm76 = vnez %v69
    %vm77 = vnez %v71
    %vm78 = vnez %v73
    %vm79 = vnez %v75
    %v80 = vsel %vm76, 16843009, 0
    %v81 = vsel %vm77, 16843009, 0
    %v82 = vsel %vm78, 16843009, 0
    %v83 = vsel %vm79, 16843009, 0
    %v84 = vunpack.c.0.s8 %v80
    %v85 = vunpack.c.0.s8 %v81
    %v86 = vunpack.c.0.s8 %v82
    %v87 = vunpack.c.0.s8 %v83
    %vm88 = vcmp.ne.s32.totalorder %v84, 0
    %vm89 = vcmp.ne.s32.totalorder %v85, 0
    %vm90 = vcmp.ne.s32.totalorder %v86, 0
    %vm91 = vcmp.ne.s32.totalorder %v87, 0
    %v92 = vsel %vm88, 1, 0
    %v93 = vsel %vm89, 1, 0
    %v94 = vsel %vm90, 1, 0
    %v95 = vsel %vm91, 1, 0
    %96 = vst [vmem:[#allocation7] sm:$0xff] %v92
    %97 = vst [vmem:[#allocation7 + $0x8] sm:$0xff] %v93
    %98 = vst [vmem:[#allocation7 + $0x10] sm:$0xff] %v94
    %99 = vst [vmem:[#allocation7 + $0x18] sm:$0xff] %v95
    %v100 = vcvt.s32.f32 %v92
    %v101 = vcvt.s32.f32 %v93
    %v102 = vcvt.s32.f32 %v94
    %v103 = vcvt.s32.f32 %v95
    %104 = vst [vmem:[#allocation8] sm:$0xff] %v100
    %105 = vst [vmem:[#allocation8 + $0x8] sm:$0xff] %v101
    %106 = vst [vmem:[#allocation8 + $0x10] sm:$0xff] %v102
    %107 = vst [vmem:[#allocation8 + $0x18] sm:$0xff] %v103
    %vm108 = vcmp.ne.s32.totalorder %v54, 0
    %vm109 = vcmp.ne.s32.totalorder %v55, 0
    %vm110 = vcmp.ne.s32.totalorder %v56, 0
    %vm111 = vcmp.ne.s32.totalorder %v57, 0
    %vm112 = vmpackc.low %vm109, %vm108
    %vm113 = vmpackc.low %vm111, %vm110
    %vm114 = vmpackc.even %vm113, %vm112
    %v115 = vsel %vm114, 16843009, 0
    %116 = vst [vmem:[%s5] sm:$0xff] %v115
    %v117 = vcvt.s32.f32 %v54
    %v118 = vcvt.s32.f32 %v55
    %v119 = vcvt.s32.f32 %v56
    %v120 = vcvt.s32.f32 %v57
    %121 = vst [vmem:[#allocation10] sm:$0xff] %v117
    %122 = vst [vmem:[#allocation10 + $0x8] sm:$0xff] %v118
    %123 = vst [vmem:[#allocation10 + $0x10] sm:$0xff] %v119
    %124 = vst [vmem:[#allocation10 + $0x18] sm:$0xff] %v120
    %vm125 = vcmp.ne.f32.partialorder %v58, 0.0
    %vm126 = vcmp.ne.f32.partialorder %v59, 0.0
    %vm127 = vcmp.ne.f32.partialorder %v60, 0.0
    %vm128 = vcmp.ne.f32.partialorder %v61, 0.0
    %vm129 = vmpackc.low %vm126, %vm125
    %vm130 = vmpackc.low %vm128, %vm127
    %vm131 = vmpackc.even %vm130, %vm129
    %v132 = vsel %vm131, 16843009, 0
    %133 = vst [vmem:[%s7] sm:$0xff] %v132
    %v134 = vcvt.f32.s32.to.zero.pseudo %v58
    %v135 = vcvt.f32.s32.to.zero.pseudo %v59
    %v136 = vcvt.f32.s32.to.zero.pseudo %v60
    %v137 = vcvt.f32.s32.to.zero.pseudo %v61
    %138 = vst [vmem:[#allocation11] sm:$0xff] %v134
    %139 = vst [vmem:[#allocation11 + $0x8] sm:$0xff] %v135
    %140 = vst [vmem:[#allocation11 + $0x10] sm:$0xff] %v136
    %141 = vst [vmem:[#allocation11 + $0x18] sm:$0xff] %v137
    // Predicated region
    $region22: #{cast_model.1} parent=1 // pred_check
      _
    $region23: #{cast_model.1} parent=1 // pred_check_branch
      %143 = sbr.rel (0) target = $region25
    $region24: #{cast_model.1} parent=1 // pred_region
      %s145 = ssub.s32 512, 512
      %146 = vsyncadd [#allocation4], %s145
      %s147 = sshll.u32 [#allocation7], 4
      %s148 = int_to_ptr.vmem [resolvable:$true] %s147
      %153 = dma.vmem_to_hbm [thread:$0]  %s148, 512, %s3, [#allocation4], 128, 128, 8
    $region25: #{cast_model.1} parent=1 // pred_fallthru
      _
    // Predicated region
    $region26: #{cast_model.1} parent=1 // pred_check
      _
    $region27: #{cast_model.1} parent=1 // pred_check_branch
      %155 = sbr.rel (0) target = $region29
    $region28: #{cast_model.1} parent=1 // pred_region
      %s157 = ssub.s32 512, 512
      %158 = vsyncadd [#allocation9], %s157
      %s159 = sshll.u32 [#allocation8], 4
      %s160 = int_to_ptr.vmem [resolvable:$true] %s159
      %165 = dma.vmem_to_hbm [thread:$0]  %s160, 512, %s4, [#allocation9], 128, 128, 8
    $region29: #{cast_model.1} parent=1 // pred_fallthru
      _
    // Predicated region
    $region30: #{cast_model.1} parent=1 // pred_check
      _
    $region31: #{cast_model.1} parent=1 // pred_check_branch
      %167 = sbr.rel (0) target = $region33
    $region32: #{cast_model.1} parent=1 // pred_region
      _
    $region33: #{cast_model.1} parent=1 // pred_fallthru
      _
    // Predicated region
    $region34: #{cast_model.1} parent=1 // pred_check
      _
    $region35: #{cast_model.1} parent=1 // pred_check_branch
      %169 = sbr.rel (0) target = $region37
    $region36: #{cast_model.1} parent=1 // pred_region
      %s171 = ssub.s32 512, 512
      %172 = vsyncadd [#allocation9], %s171
      %s173 = sshll.u32 [#allocation10], 4
      %s174 = int_to_ptr.vmem [resolvable:$true] %s173
      %179 = dma.vmem_to_hbm [thread:$0]  %s174, 512, %s6, [#allocation9], 128, 128, 8
    $region37: #{cast_model.1} parent=1 // pred_fallthru
      _
    // Predicated region
    $region38: #{cast_model.1} parent=1 // pred_check
      _
    $region39: #{cast_model.1} parent=1 // pred_check_branch
      %181 = sbr.rel (0) target = $region41
    $region40: #{cast_model.1} parent=1 // pred_region
      _
    $region41: #{cast_model.1} parent=1 // pred_fallthru
      _
    // Predicated region
    $region42: #{cast_model.1} parent=1 // pred_check
      _
    $region43: #{cast_model.1} parent=1 // pred_check_branch
      %183 = sbr.rel (0) target = $region45
    $region44: #{cast_model.1} parent=1 // pred_region
      %s185 = ssub.s32 512, 512
      %186 = vsyncadd [#allocation12], %s185
      %s187 = sshll.u32 [#allocation11], 4
      %s188 = int_to_ptr.vmem [resolvable:$true] %s187
      %193 = dma.vmem_to_hbm [thread:$0]  %s188, 512, %s8, [#allocation12], 128, 128, 8
    $region45: #{cast_model.1} parent=1 // pred_fallthru
      _
    // Predicated region
    $region46: #{cast_model.1} parent=1 // pred_check
      _
    $region47: #{cast_model.1} parent=1 // pred_check_branch
      %195 = sbr.rel (0) target = $region49
    $region48: #{cast_model.1} parent=1 // pred_region
      %196 = dma.done [#allocation4], 512
    $region49: #{cast_model.1} parent=1 // pred_fallthru
      _
    // Predicated region
    $region50: #{cast_model.1} parent=1 // pred_check
      _
    $region51: #{cast_model.1} parent=1 // pred_check_branch
      %198 = sbr.rel (0) target = $region53
    $region52: #{cast_model.1} parent=1 // pred_region
      %199 = dma.done [#allocation9], 512
    $region53: #{cast_model.1} parent=1 // pred_fallthru
      _
    // Predicated region
    $region54: #{cast_model.1} parent=1 // pred_check
      _
    $region55: #{cast_model.1} parent=1 // pred_check_branch
      %201 = sbr.rel (0) target = $region57
    $region56: #{cast_model.1} parent=1 // pred_region
      _
    $region57: #{cast_model.1} parent=1 // pred_fallthru
      _
    // Predicated region
    $region58: #{cast_model.1} parent=1 // pred_check
      _
    $region59: #{cast_model.1} parent=1 // pred_check_branch
      %203 = sbr.rel (0) target = $region61
    $region60: #{cast_model.1} parent=1 // pred_region
      %204 = dma.done [#allocation9], 512
    $region61: #{cast_model.1} parent=1 // pred_fallthru
      _
    // Predicated region
    $region62: #{cast_model.1} parent=1 // pred_check
      _
    $region63: #{cast_model.1} parent=1 // pred_check_branch
      %206 = sbr.rel (0) target = $region65
    $region64: #{cast_model.1} parent=1 // pred_region
      _
    $region65: #{cast_model.1} parent=1 // pred_fallthru
      _
    // Predicated region
    $region66: #{cast_model.1} parent=1 // pred_check
      _
    $region67: #{cast_model.1} parent=1 // pred_check_branch
      %208 = sbr.rel (0) target = $region69
    $region68: #{cast_model.1} parent=1 // pred_region
      %209 = dma.done [#allocation12], 512
    $region69: #{cast_model.1} parent=1 // pred_fallthru
      _
    %210 = vsyncpa [#allocation3], 1
    %211 = vsyncpa [#allocation6], 1
    %212 = vsyncpa [#allocation4], 1
    %213 = vsyncpa [#allocation9], 1
    %214 = vsyncpa [#allocation12], 1

</llo_original>
